<compile_context>
chip_gen: v7x
topology: tpu7x:2x2x1
jax: 0.10.0
libtpu: 0.0.40
codegen_flags: <defaults>
</compile_context>

<pallas_src>
import functools
import math

import jax
import jax.numpy as jnp
from jax.experimental import pallas as pl
from jax.experimental.pallas import tpu as pltpu


def _round_up(n, m):
    return pl.cdiv(n, m) * m


# ----------------------------- Pallas kernel --------------------------------
def fused_noisy_net_kernel(*refs, num_layers):
    """refs = (x_ref, w0, s0, n0, w1, s1, n1, ..., o_ref).

    Weight triples arrive already transposed + padded to (In_pad, Out_pad), so
    the noisy-weight build (W + sigma * noise) is pure VPU elementwise work and
    each layer is a plain `h @ W_eff` MXU matmul with lane-dense output.
    Intermediate activations never leave VMEM/vregs.
    """
    x_ref = refs[0]
    o_ref = refs[-1]
    layer_refs = refs[1:-1]

    h = x_ref[...].astype(jnp.float32)
    for l in range(num_layers):
        w_ref, s_ref, n_ref = layer_refs[3 * l:3 * l + 3]
        w_eff = w_ref[...] + s_ref[...] * n_ref[...]                    # VPU
        h = jnp.dot(h, w_eff, preferred_element_type=jnp.float32)       # MXU
        if l < num_layers - 1:                                          # ReLU
            h = jnp.maximum(h, 0.0)
    o_ref[...] = h.astype(o_ref.dtype)


# ------------------------------- Wrapper -------------------------------------
def noisy_net_forward(params, x, *, batch_tile=128):
    """Fused forward of NoisyNet.

    params: list of (W, sigma, noise), each with the PyTorch
            (out_features, in_features) layout.
    x:      (batch, in_features).
    """
    B, in0 = x.shape
    num_layers = len(params)

    # Per-layer feature widths and their 128-lane padded versions.
    feats = [in0] + [w.shape[0] for (w, _, _) in params]
    pfeats = [_round_up(f, 128) for f in feats]

    # Batch tile: >= 8 sublanes, <= batch_tile, divides the padded batch.
    tb = min(batch_tile, _round_up(B, 8))
    b_pad = _round_up(B, tb)

    # One-time (XLA) transpose + zero-pad of each weight triple to (In_pad, Out_pad).
    def prep(a, in_p, out_p):
        a = a.T  # (In, Out)
        return jnp.pad(a, ((0, in_p - a.shape[0]), (0, out_p - a.shape[1])))

    flat_inputs = [jnp.pad(x, ((0, b_pad - B), (0, pfeats[0] - in0)))]
    in_specs = [pl.BlockSpec((tb, pfeats[0]), lambda i: (i, 0))]
    for l, (w, s, n) in enumerate(params):
        in_p, out_p = pfeats[l], pfeats[l + 1]
        for a in (w, s, n):
            flat_inputs.append(prep(a, in_p, out_p))
            # Full-array (constant) block: stays resident across batch tiles.
            in_specs.append(pl.BlockSpec((in_p, out_p), lambda i: (0, 0)))

    kernel = functools.partial(fused_noisy_net_kernel, num_layers=num_layers)

    out_pad = pl.pallas_call(
        kernel,
        out_shape=jax.ShapeDtypeStruct((b_pad, pfeats[-1]), x.dtype),
        grid=(b_pad // tb,),
        in_specs=in_specs,
        out_specs=pl.BlockSpec((tb, pfeats[-1]), lambda i: (i, 0)),
        compiler_params=pltpu.CompilerParams(
            # Batch tiles are independent -> shard across TensorCores on v7x.
            dimension_semantics=("parallel",),
        ),
    )(*flat_inputs)

    return out_pad[:B, :feats[-1]]


# --------------------------- Parameter setup ---------------------------------
def kaiming_uniform(key, out_features, in_features):
    # nn.init.kaiming_uniform_ default (a=0, fan_in, leaky_relu), as used by
    # initialize_weights(): bound = sqrt(6 / fan_in).
    bound = math.sqrt(6.0 / in_features)
    return jax.random.uniform(
        key, (out_features, in_features), jnp.float32, -bound, bound
    )


def init_noisy_net(key, layers):
    """layers: e.g. (16, 32, 32, 8) -> list of (W, sigma, noise) per layer."""
    params = []
    for fin, fout in zip(layers[:-1], layers[1:]):
        key, wk, nk = jax.random.split(key, 3)
        w = kaiming_uniform(wk, fout, fin)
        sigma = jnp.full((fout, fin), 0.017, jnp.float32)
        # Equivalent of module.sample_noise(): independent Gaussian per weight.
        # (remove_noise() is just zeros here -- handled outside the kernel.)
        noise = jax.random.normal(nk, (fout, fin), jnp.float32)
        params.append((w, sigma, noise))
    return params


# Pure-JAX reference (matches the PyTorch forward) for correctness checking.
def noisy_net_ref(params, x):
    for i, (w, sigma, noise) in enumerate(params):
        y = x @ (w + sigma * noise).T
        x = y if i == len(params) - 1 else jnp.maximum(y, 0.0)
    return x


# --------------------------------- Main --------------------------------------
if __name__ == "__main__":
    key = jax.random.PRNGKey(0)
    key, xk, pk = jax.random.split(key, 3)

    layers = (16, 32, 32, 8)   # NoisyNet([16, 32, 32, 8])
    batch = 2

    x = jax.random.normal(xk, (batch, layers[0]), jnp.float32)
    params = init_noisy_net(pk, layers)

    fwd = jax.jit(noisy_net_forward)
    out = jax.block_until_ready(fwd(params, x))

    ref = noisy_net_ref(params, x)
    assert out.shape == (batch, layers[-1])
    assert jnp.allclose(out, ref, atol=1e-4, rtol=1e-4)

    print("KERNEL_OK")
</pallas_src>

<mosaic_0001>
module attributes {stable_mosaic.version = 11 : i64} {
  func.func @fused_noisy_net_kernel(%arg0: i32, %arg1: memref<8x128xf32, #tpu.memory_space<vmem>>, %arg2: memref<128x128xf32, #tpu.memory_space<vmem>>, %arg3: memref<128x128xf32, #tpu.memory_space<vmem>>, %arg4: memref<128x128xf32, #tpu.memory_space<vmem>>, %arg5: memref<128x128xf32, #tpu.memory_space<vmem>>, %arg6: memref<128x128xf32, #tpu.memory_space<vmem>>, %arg7: memref<128x128xf32, #tpu.memory_space<vmem>>, %arg8: memref<128x128xf32, #tpu.memory_space<vmem>>, %arg9: memref<128x128xf32, #tpu.memory_space<vmem>>, %arg10: memref<128x128xf32, #tpu.memory_space<vmem>>, %arg11: memref<8x128xf32, #tpu.memory_space<vmem>>) attributes {dimension_semantics = [#tpu.dimension_semantics<parallel>], iteration_bounds = array<i64: 1>, scalar_prefetch = 0 : i64, scratch_operands = 0 : i64, tpu.core_type = #tpu.core_type<tc>, window_params = [{transform_indices = @transform_0, window_bounds = array<i64: 8, 128>}, {pipeline_mode = #tpu.pipeline_mode<synchronous>, transform_indices = @transform_1, window_bounds = array<i64: 128, 128>}, {pipeline_mode = #tpu.pipeline_mode<synchronous>, transform_indices = @transform_2, window_bounds = array<i64: 128, 128>}, {pipeline_mode = #tpu.pipeline_mode<synchronous>, transform_indices = @transform_3, window_bounds = array<i64: 128, 128>}, {pipeline_mode = #tpu.pipeline_mode<synchronous>, transform_indices = @transform_4, window_bounds = array<i64: 128, 128>}, {pipeline_mode = #tpu.pipeline_mode<synchronous>, transform_indices = @transform_5, window_bounds = array<i64: 128, 128>}, {pipeline_mode = #tpu.pipeline_mode<synchronous>, transform_indices = @transform_6, window_bounds = array<i64: 128, 128>}, {pipeline_mode = #tpu.pipeline_mode<synchronous>, transform_indices = @transform_7, window_bounds = array<i64: 128, 128>}, {pipeline_mode = #tpu.pipeline_mode<synchronous>, transform_indices = @transform_8, window_bounds = array<i64: 128, 128>}, {pipeline_mode = #tpu.pipeline_mode<synchronous>, transform_indices = @transform_9, window_bounds = array<i64: 128, 128>}, {transform_indices = @transform_10, window_bounds = array<i64: 8, 128>}]} {
    %c0 = arith.constant 0 : index
    %c0_0 = arith.constant 0 : index
    %0 = vector.load %arg1[%c0, %c0_0] : memref<8x128xf32, #tpu.memory_space<vmem>>, vector<8x128xf32>
    %c0_1 = arith.constant 0 : index
    %c0_2 = arith.constant 0 : index
    %1 = vector.load %arg2[%c0_1, %c0_2] : memref<128x128xf32, #tpu.memory_space<vmem>>, vector<128x128xf32>
    %c0_3 = arith.constant 0 : index
    %c0_4 = arith.constant 0 : index
    %2 = vector.load %arg3[%c0_3, %c0_4] : memref<128x128xf32, #tpu.memory_space<vmem>>, vector<128x128xf32>
    %c0_5 = arith.constant 0 : index
    %c0_6 = arith.constant 0 : index
    %3 = vector.load %arg4[%c0_5, %c0_6] : memref<128x128xf32, #tpu.memory_space<vmem>>, vector<128x128xf32>
    %4 = arith.mulf %2, %3 : vector<128x128xf32>
    %5 = arith.addf %1, %4 : vector<128x128xf32>
    %cst = arith.constant dense<0.000000e+00> : vector<8x128xf32>
    %6 = tpu.matmul %0, %5, %cst {dimension_numbers = #tpu.dot_dimension_numbers<[1], [0], [0], [1], [0, 0, 1, 1], [], []>} : vector<8x128xf32>, vector<128x128xf32>, vector<8x128xf32> -> vector<8x128xf32>
    %cst_7 = arith.constant 0.000000e+00 : f32
    %7 = vector.broadcast %cst_7 : f32 to vector<8x128xf32>
    %8 = arith.maximumf %6, %7 : vector<8x128xf32>
    %c0_8 = arith.constant 0 : index
    %c0_9 = arith.constant 0 : index
    %9 = vector.load %arg5[%c0_8, %c0_9] : memref<128x128xf32, #tpu.memory_space<vmem>>, vector<128x128xf32>
    %c0_10 = arith.constant 0 : index
    %c0_11 = arith.constant 0 : index
    %10 = vector.load %arg6[%c0_10, %c0_11] : memref<128x128xf32, #tpu.memory_space<vmem>>, vector<128x128xf32>
    %c0_12 = arith.constant 0 : index
    %c0_13 = arith.constant 0 : index
    %11 = vector.load %arg7[%c0_12, %c0_13] : memref<128x128xf32, #tpu.memory_space<vmem>>, vector<128x128xf32>
    %12 = arith.mulf %10, %11 : vector<128x128xf32>
    %13 = arith.addf %9, %12 : vector<128x128xf32>
    %cst_14 = arith.constant dense<0.000000e+00> : vector<8x128xf32>
    %14 = tpu.matmul %8, %13, %cst_14 {dimension_numbers = #tpu.dot_dimension_numbers<[1], [0], [0], [1], [0, 0, 1, 1], [], []>} : vector<8x128xf32>, vector<128x128xf32>, vector<8x128xf32> -> vector<8x128xf32>
    %cst_15 = arith.constant 0.000000e+00 : f32
    %15 = vector.broadcast %cst_15 : f32 to vector<8x128xf32>
    %16 = arith.maximumf %14, %15 : vector<8x128xf32>
    %c0_16 = arith.constant 0 : index
    %c0_17 = arith.constant 0 : index
    %17 = vector.load %arg8[%c0_16, %c0_17] : memref<128x128xf32, #tpu.memory_space<vmem>>, vector<128x128xf32>
    %c0_18 = arith.constant 0 : index
    %c0_19 = arith.constant 0 : index
    %18 = vector.load %arg9[%c0_18, %c0_19] : memref<128x128xf32, #tpu.memory_space<vmem>>, vector<128x128xf32>
    %c0_20 = arith.constant 0 : index
    %c0_21 = arith.constant 0 : index
    %19 = vector.load %arg10[%c0_20, %c0_21] : memref<128x128xf32, #tpu.memory_space<vmem>>, vector<128x128xf32>
    %20 = arith.mulf %18, %19 : vector<128x128xf32>
    %21 = arith.addf %17, %20 : vector<128x128xf32>
    %cst_22 = arith.constant dense<0.000000e+00> : vector<8x128xf32>
    %22 = tpu.matmul %16, %21, %cst_22 {dimension_numbers = #tpu.dot_dimension_numbers<[1], [0], [0], [1], [0, 0, 1, 1], [], []>} : vector<8x128xf32>, vector<128x128xf32>, vector<8x128xf32> -> vector<8x128xf32>
    %c0_23 = arith.constant 0 : index
    %c0_24 = arith.constant 0 : index
    %23 = vector.load %arg11[%c0_23, %c0_24] : memref<8x128xf32, #tpu.memory_space<vmem>>, vector<8x128xf32>
    tpu.vector_store %arg11[%c0_23, %c0_24], %22 {strides = array<i32>} : memref<8x128xf32, #tpu.memory_space<vmem>>, vector<8x128xf32>,
    return
  }
  func.func @transform_0(%arg0: i32) -> (i32, i32) {
    %c0_i32 = arith.constant 0 : i32
    %c0_i32_0 = arith.constant 0 : i32
    return %arg0, %c0_i32 : i32, i32
  }
  func.func @transform_1(%arg0: i32) -> (i32, i32) {
    %c0_i32 = arith.constant 0 : i32
    %c0_i32_0 = arith.constant 0 : i32
    %c0_i32_1 = arith.constant 0 : i32
    return %c0_i32, %c0_i32_0 : i32, i32
  }
  func.func @transform_2(%arg0: i32) -> (i32, i32) {
    %c0_i32 = arith.constant 0 : i32
    %c0_i32_0 = arith.constant 0 : i32
    %c0_i32_1 = arith.constant 0 : i32
    return %c0_i32, %c0_i32_0 : i32, i32
  }
  func.func @transform_3(%arg0: i32) -> (i32, i32) {
    %c0_i32 = arith.constant 0 : i32
    %c0_i32_0 = arith.constant 0 : i32
    %c0_i32_1 = arith.constant 0 : i32
    return %c0_i32, %c0_i32_0 : i32, i32
  }
  func.func @transform_4(%arg0: i32) -> (i32, i32) {
    %c0_i32 = arith.constant 0 : i32
    %c0_i32_0 = arith.constant 0 : i32
    %c0_i32_1 = arith.constant 0 : i32
    return %c0_i32, %c0_i32_0 : i32, i32
  }
  func.func @transform_5(%arg0: i32) -> (i32, i32) {
    %c0_i32 = arith.constant 0 : i32
    %c0_i32_0 = arith.constant 0 : i32
    %c0_i32_1 = arith.constant 0 : i32
    return %c0_i32, %c0_i32_0 : i32, i32
  }
  func.func @transform_6(%arg0: i32) -> (i32, i32) {
    %c0_i32 = arith.constant 0 : i32
    %c0_i32_0 = arith.constant 0 : i32
    %c0_i32_1 = arith.constant 0 : i32
    return %c0_i32, %c0_i32_0 : i32, i32
  }
  func.func @transform_7(%arg0: i32) -> (i32, i32) {
    %c0_i32 = arith.constant 0 : i32
    %c0_i32_0 = arith.constant 0 : i32
    %c0_i32_1 = arith.constant 0 : i32
    return %c0_i32, %c0_i32_0 : i32, i32
  }
  func.func @transform_8(%arg0: i32) -> (i32, i32) {
    %c0_i32 = arith.constant 0 : i32
    %c0_i32_0 = arith.constant 0 : i32
    %c0_i32_1 = arith.constant 0 : i32
    return %c0_i32, %c0_i32_0 : i32, i32
  }
  func.func @transform_9(%arg0: i32) -> (i32, i32) {
    %c0_i32 = arith.constant 0 : i32
    %c0_i32_0 = arith.constant 0 : i32
    %c0_i32_1 = arith.constant 0 : i32
    return %c0_i32, %c0_i32_0 : i32, i32
  }
  func.func @transform_10(%arg0: i32) -> (i32, i32) {
    %c0_i32 = arith.constant 0 : i32
    %c0_i32_0 = arith.constant 0 : i32
    return %arg0, %c0_i32 : i32, i32
  }
}

</mosaic_0001>

<llo_original>
// kernel: noisy_net_forward.1
$region0: #{noisy_net_forward.1}
  #allocation0 [shape = 'u32[]', space=smem, size = 0x4, offset = 0x4, fixed_abs, tag = 'smem constant byte address 0x4 - core index']
  #allocation1 [shape = 'u32[144,128]{1,0:T(1,128)}', space=vmem, size = 0x12000, scoped, tag = 'internal scratch']
  %s0 = inlined_call_operand.vmem [shape: f32[8,128], index: 0, kind: input, shape index: {}]
  %s1 = inlined_call_operand.vmem [shape: f32[128,128], index: 1, kind: input, shape index: {}]
  %s2 = inlined_call_operand.vmem [shape: f32[128,128], index: 2, kind: input, shape index: {}]
  %s3 = inlined_call_operand.vmem [shape: f32[128,128], index: 3, kind: input, shape index: {}]
  %s4 = inlined_call_operand.vmem [shape: f32[128,128], index: 4, kind: input, shape index: {}]
  %s5 = inlined_call_operand.vmem [shape: f32[128,128], index: 5, kind: input, shape index: {}]
  %s6 = inlined_call_operand.vmem [shape: f32[128,128], index: 6, kind: input, shape index: {}]
  %s7 = inlined_call_operand.vmem [shape: f32[128,128], index: 7, kind: input, shape index: {}]
  %s8 = inlined_call_operand.vmem [shape: f32[128,128], index: 8, kind: input, shape index: {}]
  %s9 = inlined_call_operand.vmem [shape: f32[128,128], index: 9, kind: input, shape index: {}]
  %s10 = inlined_call_operand.vmem [shape: f32[8,128], index: 10, kind: output, shape index: {}]
  %s11 = sld [smem:[#allocation0]]
  $region50: #{noisy_net_forward.1} parent=0
    _
  %s13 = ssub.s32 1, %s11
  %s14 = scalar_select 0, %s13, %s11
  // Predicated region
  $region2: #{noisy_net_forward.1} parent=0 // pred_check
    _
  $region3: #{noisy_net_forward.1} parent=0 // pred_check_branch
    %16 = sbr.rel (0) target = $region5
  $region4: #{noisy_net_forward.1} parent=0 // pred_region
    _
  $region5: #{noisy_net_forward.1} parent=0 // pred_fallthru
    _
  // Predicated region
  $region6: #{noisy_net_forward.1} parent=0 // pred_check
    _
  $region7: #{noisy_net_forward.1} parent=0 // pred_check_branch
    %18 = sbr.rel (0) target = $region9
  $region8: #{noisy_net_forward.1} parent=0 // pred_region
    _
  $region9: #{noisy_net_forward.1} parent=0 // pred_fallthru
    _
  // Predicated region
  $region10: #{noisy_net_forward.1} parent=0 // pred_check
    _
  $region11: #{noisy_net_forward.1} parent=0 // pred_check_branch
    %20 = sbr.rel (0) target = $region13
  $region12: #{noisy_net_forward.1} parent=0 // pred_region
    _
  $region13: #{noisy_net_forward.1} parent=0 // pred_fallthru
    _
  // Predicated region
  $region14: #{noisy_net_forward.1} parent=0 // pred_check
    _
  $region15: #{noisy_net_forward.1} parent=0 // pred_check_branch
    %22 = sbr.rel (0) target = $region17
  $region16: #{noisy_net_forward.1} parent=0 // pred_region
    _
  $region17: #{noisy_net_forward.1} parent=0 // pred_fallthru
    _
  // Predicated region
  $region18: #{noisy_net_forward.1} parent=0 // pred_check
    _
  $region19: #{noisy_net_forward.1} parent=0 // pred_check_branch
    %24 = sbr.rel (0) target = $region21
  $region20: #{noisy_net_forward.1} parent=0 // pred_region
    _
  $region21: #{noisy_net_forward.1} parent=0 // pred_fallthru
    _
  // Predicated region
  $region22: #{noisy_net_forward.1} parent=0 // pred_check
    _
  $region23: #{noisy_net_forward.1} parent=0 // pred_check_branch
    %26 = sbr.rel (0) target = $region25
  $region24: #{noisy_net_forward.1} parent=0 // pred_region
    _
  $region25: #{noisy_net_forward.1} parent=0 // pred_fallthru
    _
  // Predicated region
  $region26: #{noisy_net_forward.1} parent=0 // pred_check
    _
  $region27: #{noisy_net_forward.1} parent=0 // pred_check_branch
    %28 = sbr.rel (0) target = $region29
  $region28: #{noisy_net_forward.1} parent=0 // pred_region
    _
  $region29: #{noisy_net_forward.1} parent=0 // pred_fallthru
    _
  // Predicated region
  $region30: #{noisy_net_forward.1} parent=0 // pred_check
    _
  $region31: #{noisy_net_forward.1} parent=0 // pred_check_branch
    %30 = sbr.rel (0) target = $region33
  $region32: #{noisy_net_forward.1} parent=0 // pred_region
    _
  $region33: #{noisy_net_forward.1} parent=0 // pred_fallthru
    _
  // Predicated region
  $region34: #{noisy_net_forward.1} parent=0 // pred_check
    _
  $region35: #{noisy_net_forward.1} parent=0 // pred_check_branch
    %32 = sbr.rel (0) target = $region37
  $region36: #{noisy_net_forward.1} parent=0 // pred_region
    _
  $region37: #{noisy_net_forward.1} parent=0 // pred_fallthru
    _
  // Predicated region
  $region38: #{noisy_net_forward.1} parent=0 // pred_check
    _
  $region39: #{noisy_net_forward.1} parent=0 // pred_check_branch
    %34 = sbr.rel (0) target = $region41
  $region40: #{noisy_net_forward.1} parent=0 // pred_region
    _
  $region41: #{noisy_net_forward.1} parent=0 // pred_fallthru
    _
  %v35 = vld [vmem:[%s0] sm:$0xff]
  %v36 = vld [vmem:[%s1] sm:$0xff]
  %v37 = vld [vmem:[%s1 + $0x8] sm:$0xff]
  %v38 = vld [vmem:[%s1 + $0x10] sm:$0xff]
  %v39 = vld [vmem:[%s1 + $0x18] sm:$0xff]
  %v40 = vld [vmem:[%s1 + $0x20] sm:$0xff]
  %v41 = vld [vmem:[%s1 + $0x28] sm:$0xff]
  %v42 = vld [vmem:[%s1 + $0x30] sm:$0xff]
  %v43 = vld [vmem:[%s1 + $0x38] sm:$0xff]
  %v44 = vld [vmem:[%s1 + $0x40] sm:$0xff]
  %v45 = vld [vmem:[%s1 + $0x48] sm:$0xff]
  %v46 = vld [vmem:[%s1 + $0x50] sm:$0xff]
  %v47 = vld [vmem:[%s1 + $0x58] sm:$0xff]
  %v48 = vld [vmem:[%s1 + $0x60] sm:$0xff]
  %v49 = vld [vmem:[%s1 + $0x68] sm:$0xff]
  %v50 = vld [vmem:[%s1 + $0x70] sm:$0xff]
  %v51 = vld [vmem:[%s1 + $0x78] sm:$0xff]
  %v52 = vld [vmem:[%s2] sm:$0xff]
  %v53 = vld [vmem:[%s2 + $0x8] sm:$0xff]
  %v54 = vld [vmem:[%s2 + $0x10] sm:$0xff]
  %v55 = vld [vmem:[%s2 + $0x18] sm:$0xff]
  %v56 = vld [vmem:[%s2 + $0x20] sm:$0xff]
  %v57 = vld [vmem:[%s2 + $0x28] sm:$0xff]
  %v58 = vld [vmem:[%s2 + $0x30] sm:$0xff]
  %v59 = vld [vmem:[%s2 + $0x38] sm:$0xff]
  %v60 = vld [vmem:[%s2 + $0x40] sm:$0xff]
  %v61 = vld [vmem:[%s2 + $0x48] sm:$0xff]
  %v62 = vld [vmem:[%s2 + $0x50] sm:$0xff]
  %v63 = vld [vmem:[%s2 + $0x58] sm:$0xff]
  %v64 = vld [vmem:[%s2 + $0x60] sm:$0xff]
  %v65 = vld [vmem:[%s2 + $0x68] sm:$0xff]
  %v66 = vld [vmem:[%s2 + $0x70] sm:$0xff]
  %v67 = vld [vmem:[%s2 + $0x78] sm:$0xff]
  %v68 = vld [vmem:[%s3] sm:$0xff]
  %v69 = vld [vmem:[%s3 + $0x8] sm:$0xff]
  %v70 = vld [vmem:[%s3 + $0x10] sm:$0xff]
  %v71 = vld [vmem:[%s3 + $0x18] sm:$0xff]
  %v72 = vld [vmem:[%s3 + $0x20] sm:$0xff]
  %v73 = vld [vmem:[%s3 + $0x28] sm:$0xff]
  %v74 = vld [vmem:[%s3 + $0x30] sm:$0xff]
  %v75 = vld [vmem:[%s3 + $0x38] sm:$0xff]
  %v76 = vld [vmem:[%s3 + $0x40] sm:$0xff]
  %v77 = vld [vmem:[%s3 + $0x48] sm:$0xff]
  %v78 = vld [vmem:[%s3 + $0x50] sm:$0xff]
  %v79 = vld [vmem:[%s3 + $0x58] sm:$0xff]
  %v80 = vld [vmem:[%s3 + $0x60] sm:$0xff]
  %v81 = vld [vmem:[%s3 + $0x68] sm:$0xff]
  %v82 = vld [vmem:[%s3 + $0x70] sm:$0xff]
  %v83 = vld [vmem:[%s3 + $0x78] sm:$0xff]
  %v84 = vmul.f32 %v52, %v68
  %v85 = vmul.f32 %v53, %v69
  %v86 = vmul.f32 %v54, %v70
  %v87 = vmul.f32 %v55, %v71
  %v88 = vmul.f32 %v56, %v72
  %v89 = vmul.f32 %v57, %v73
  %v90 = vmul.f32 %v58, %v74
  %v91 = vmul.f32 %v59, %v75
  %v92 = vmul.f32 %v60, %v76
  %v93 = vmul.f32 %v61, %v77
  %v94 = vmul.f32 %v62, %v78
  %v95 = vmul.f32 %v63, %v79
  %v96 = vmul.f32 %v64, %v80
  %v97 = vmul.f32 %v65, %v81
  %v98 = vmul.f32 %v66, %v82
  %v99 = vmul.f32 %v67, %v83
  %v100 = vadd.f32 %v36, %v84
  %v101 = vadd.f32 %v37, %v85
  %v102 = vadd.f32 %v38, %v86
  %v103 = vadd.f32 %v39, %v87
  %v104 = vadd.f32 %v40, %v88
  %v105 = vadd.f32 %v41, %v89
  %v106 = vadd.f32 %v42, %v90
  %v107 = vadd.f32 %v43, %v91
  %v108 = vadd.f32 %v44, %v92
  %v109 = vadd.f32 %v45, %v93
  %v110 = vadd.f32 %v46, %v94
  %v111 = vadd.f32 %v47, %v95
  %v112 = vadd.f32 %v48, %v96
  %v113 = vadd.f32 %v49, %v97
  %v114 = vadd.f32 %v50, %v98
  %v115 = vadd.f32 %v51, %v99
  %116 = vmatprep.subr.mxu0 0.0
  %117 = vmatpush1.msra.mxu0 %v100
  %118 = vmatprep.subr.mxu0 0.0
  %119 = vmatpush1.msra.mxu0 %v101
  %120 = vmatprep.subr.mxu0 0.0
  %121 = vmatpush1.msra.mxu0 %v102
  %122 = vmatprep.subr.mxu0 0.0
  %123 = vmatpush1.msra.mxu0 %v103
  %124 = vmatprep.subr.mxu0 0.0
  %125 = vmatpush1.msra.mxu0 %v104
  %126 = vmatprep.subr.mxu0 0.0
  %127 = vmatpush1.msra.mxu0 %v105
  %128 = vmatprep.subr.mxu0 0.0
  %129 = vmatpush1.msra.mxu0 %v106
  %130 = vmatprep.subr.mxu0 0.0
  %131 = vmatpush1.msra.mxu0 %v107
  %132 = vmatprep.subr.mxu0 0.0
  %133 = vmatpush1.msra.mxu0 %v108
  %134 = vmatprep.subr.mxu0 0.0
  %135 = vmatpush1.msra.mxu0 %v109
  %136 = vmatprep.subr.mxu0 0.0
  %137 = vmatpush1.msra.mxu0 %v110
  %138 = vmatprep.subr.mxu0 0.0
  %139 = vmatpush1.msra.mxu0 %v111
  %140 = vmatprep.subr.mxu0 0.0
  %141 = vmatpush1.msra.mxu0 %v112
  %142 = vmatprep.subr.mxu0 0.0
  %143 = vmatpush1.msra.mxu0 %v113
  %144 = vmatprep.subr.mxu0 0.0
  %145 = vmatpush1.msra.mxu0 %v114
  %146 = vmatprep.subr.mxu0 0.0
  %147 = vmatpush1.msra.mxu0 %v115
  %148 = vmatprep.subr.mxu0 0.0
  %149 = vmatpush1.msra.mxu0 0.0
  %150 = vmatprep.subr.mxu0 0.0
  %151 = vmatpush1.msra.mxu0 0.0
  %152 = vmatprep.subr.mxu0 0.0
  %153 = vmatpush1.msra.mxu0 0.0
  %154 = vmatprep.subr.mxu0 0.0
  %155 = vmatpush1.msra.mxu0 0.0
  %156 = vmatprep.subr.mxu0 0.0
  %157 = vmatpush1.msra.mxu0 0.0
  %158 = vmatprep.subr.mxu0 0.0
  %159 = vmatpush1.msra.mxu0 0.0
  %160 = vmatprep.subr.mxu0 0.0
  %161 = vmatpush1.msra.mxu0 0.0
  %162 = vmatprep.subr.mxu0 0.0
  %163 = vmatpush1.msra.mxu0 0.0
  %164 = vmatprep.subr.mxu0 0.0
  %165 = vmatpush1.msra.mxu0 0.0
  %166 = vmatprep.subr.mxu0 0.0
  %167 = vmatpush1.msra.mxu0 0.0
  %168 = vmatprep.subr.mxu0 0.0
  %169 = vmatpush1.msra.mxu0 0.0
  %170 = vmatprep.subr.mxu0 0.0
  %171 = vmatpush1.msra.mxu0 0.0
  %172 = vmatprep.subr.mxu0 0.0
  %173 = vmatpush1.msra.mxu0 0.0
  %174 = vmatprep.subr.mxu0 0.0
  %175 = vmatpush1.msra.mxu0 0.0
  %176 = vmatprep.subr.mxu0 0.0
  %177 = vmatpush1.msra.mxu0 0.0
  %178 = vmatprep.subr.mxu0 0.0
  %179 = vmatpush1.msra.mxu0 0.0
  %180 = vmatprep.mubr.f32.mxu0 0.0
  %181 = vmatmul.mubr.f32.gmra.mrb[0].mxu0 %v35
  %v182 = vpop.f32.mrb[0].mxu0
  %v183 = vadd.f32 0.0, %v182
  %v184 = vpop.f32.mrb[0].mxu0
  %185 = vdwg.mxu0
  %v186 = vmax.f32 %v183, 0.0
  %v187 = vld [vmem:[%s4] sm:$0xff]
  %v188 = vld [vmem:[%s4 + $0x8] sm:$0xff]
  %v189 = vld [vmem:[%s4 + $0x10] sm:$0xff]
  %v190 = vld [vmem:[%s4 + $0x18] sm:$0xff]
  %v191 = vld [vmem:[%s4 + $0x20] sm:$0xff]
  %v192 = vld [vmem:[%s4 + $0x28] sm:$0xff]
  %v193 = vld [vmem:[%s4 + $0x30] sm:$0xff]
  %v194 = vld [vmem:[%s4 + $0x38] sm:$0xff]
  %v195 = vld [vmem:[%s4 + $0x40] sm:$0xff]
  %v196 = vld [vmem:[%s4 + $0x48] sm:$0xff]
  %v197 = vld [vmem:[%s4 + $0x50] sm:$0xff]
  %v198 = vld [vmem:[%s4 + $0x58] sm:$0xff]
  %v199 = vld [vmem:[%s4 + $0x60] sm:$0xff]
  %v200 = vld [vmem:[%s4 + $0x68] sm:$0xff]
  %v201 = vld [vmem:[%s4 + $0x70] sm:$0xff]
  %v202 = vld [vmem:[%s4 + $0x78] sm:$0xff]
  %v203 = vld [vmem:[%s5] sm:$0xff]
  %v204 = vld [vmem:[%s5 + $0x8] sm:$0xff]
  %v205 = vld [vmem:[%s5 + $0x10] sm:$0xff]
  %v206 = vld [vmem:[%s5 + $0x18] sm:$0xff]
  %v207 = vld [vmem:[%s5 + $0x20] sm:$0xff]
  %v208 = vld [vmem:[%s5 + $0x28] sm:$0xff]
  %v209 = vld [vmem:[%s5 + $0x30] sm:$0xff]
  %v210 = vld [vmem:[%s5 + $0x38] sm:$0xff]
  %v211 = vld [vmem:[%s5 + $0x40] sm:$0xff]
  %v212 = vld [vmem:[%s5 + $0x48] sm:$0xff]
  %v213 = vld [vmem:[%s5 + $0x50] sm:$0xff]
  %v214 = vld [vmem:[%s5 + $0x58] sm:$0xff]
  %v215 = vld [vmem:[%s5 + $0x60] sm:$0xff]
  %v216 = vld [vmem:[%s5 + $0x68] sm:$0xff]
  %v217 = vld [vmem:[%s5 + $0x70] sm:$0xff]
  %v218 = vld [vmem:[%s5 + $0x78] sm:$0xff]
  %v219 = vld [vmem:[%s6] sm:$0xff]
  %v220 = vld [vmem:[%s6 + $0x8] sm:$0xff]
  %v221 = vld [vmem:[%s6 + $0x10] sm:$0xff]
  %v222 = vld [vmem:[%s6 + $0x18] sm:$0xff]
  %v223 = vld [vmem:[%s6 + $0x20] sm:$0xff]
  %v224 = vld [vmem:[%s6 + $0x28] sm:$0xff]
  %v225 = vld [vmem:[%s6 + $0x30] sm:$0xff]
  %v226 = vld [vmem:[%s6 + $0x38] sm:$0xff]
  %v227 = vld [vmem:[%s6 + $0x40] sm:$0xff]
  %v228 = vld [vmem:[%s6 + $0x48] sm:$0xff]
  %v229 = vld [vmem:[%s6 + $0x50] sm:$0xff]
  %v230 = vld [vmem:[%s6 + $0x58] sm:$0xff]
  %v231 = vld [vmem:[%s6 + $0x60] sm:$0xff]
  %v232 = vld [vmem:[%s6 + $0x68] sm:$0xff]
  %v233 = vld [vmem:[%s6 + $0x70] sm:$0xff]
  %v234 = vld [vmem:[%s6 + $0x78] sm:$0xff]
  %v235 = vmul.f32 %v203, %v219
  %v236 = vmul.f32 %v204, %v220
  %v237 = vmul.f32 %v205, %v221
  %v238 = vmul.f32 %v206, %v222
  %v239 = vmul.f32 %v207, %v223
  %v240 = vmul.f32 %v208, %v224
  %v241 = vmul.f32 %v209, %v225
  %v242 = vmul.f32 %v210, %v226
  %v243 = vmul.f32 %v211, %v227
  %v244 = vmul.f32 %v212, %v228
  %v245 = vmul.f32 %v213, %v229
  %v246 = vmul.f32 %v214, %v230
  %v247 = vmul.f32 %v215, %v231
  %v248 = vmul.f32 %v216, %v232
  %v249 = vmul.f32 %v217, %v233
  %v250 = vmul.f32 %v218, %v234
  %v251 = vadd.f32 %v187, %v235
  %v252 = vadd.f32 %v188, %v236
  %v253 = vadd.f32 %v189, %v237
  %v254 = vadd.f32 %v190, %v238
  %v255 = vadd.f32 %v191, %v239
  %v256 = vadd.f32 %v192, %v240
  %v257 = vadd.f32 %v193, %v241
  %v258 = vadd.f32 %v194, %v242
  %v259 = vadd.f32 %v195, %v243
  %v260 = vadd.f32 %v196, %v244
  %v261 = vadd.f32 %v197, %v245
  %v262 = vadd.f32 %v198, %v246
  %v263 = vadd.f32 %v199, %v247
  %v264 = vadd.f32 %v200, %v248
  %v265 = vadd.f32 %v201, %v249
  %v266 = vadd.f32 %v202, %v250
  %267 = vmatprep.subr.mxu0 0.0
  %268 = vmatpush1.msra.mxu0 %v251
  %269 = vmatprep.subr.mxu0 0.0
  %270 = vmatpush1.msra.mxu0 %v252
  %271 = vmatprep.subr.mxu0 0.0
  %272 = vmatpush1.msra.mxu0 %v253
  %273 = vmatprep.subr.mxu0 0.0
  %274 = vmatpush1.msra.mxu0 %v254
  %275 = vmatprep.subr.mxu0 0.0
  %276 = vmatpush1.msra.mxu0 %v255
  %277 = vmatprep.subr.mxu0 0.0
  %278 = vmatpush1.msra.mxu0 %v256
  %279 = vmatprep.subr.mxu0 0.0
  %280 = vmatpush1.msra.mxu0 %v257
  %281 = vmatprep.subr.mxu0 0.0
  %282 = vmatpush1.msra.mxu0 %v258
  %283 = vmatprep.subr.mxu0 0.0
  %284 = vmatpush1.msra.mxu0 %v259
  %285 = vmatprep.subr.mxu0 0.0
  %286 = vmatpush1.msra.mxu0 %v260
  %287 = vmatprep.subr.mxu0 0.0
  %288 = vmatpush1.msra.mxu0 %v261
  %289 = vmatprep.subr.mxu0 0.0
  %290 = vmatpush1.msra.mxu0 %v262
  %291 = vmatprep.subr.mxu0 0.0
  %292 = vmatpush1.msra.mxu0 %v263
  %293 = vmatprep.subr.mxu0 0.0
  %294 = vmatpush1.msra.mxu0 %v264
  %295 = vmatprep.subr.mxu0 0.0
  %296 = vmatpush1.msra.mxu0 %v265
  %297 = vmatprep.subr.mxu0 0.0
  %298 = vmatpush1.msra.mxu0 %v266
  %299 = vmatprep.subr.mxu0 0.0
  %300 = vmatpush1.msra.mxu0 0.0
  %301 = vmatprep.subr.mxu0 0.0
  %302 = vmatpush1.msra.mxu0 0.0
  %303 = vmatprep.subr.mxu0 0.0
  %304 = vmatpush1.msra.mxu0 0.0
  %305 = vmatprep.subr.mxu0 0.0
  %306 = vmatpush1.msra.mxu0 0.0
  %307 = vmatprep.subr.mxu0 0.0
  %308 = vmatpush1.msra.mxu0 0.0
  %309 = vmatprep.subr.mxu0 0.0
  %310 = vmatpush1.msra.mxu0 0.0
  %311 = vmatprep.subr.mxu0 0.0
  %312 = vmatpush1.msra.mxu0 0.0
  %313 = vmatprep.subr.mxu0 0.0
  %314 = vmatpush1.msra.mxu0 0.0
  %315 = vmatprep.subr.mxu0 0.0
  %316 = vmatpush1.msra.mxu0 0.0
  %317 = vmatprep.subr.mxu0 0.0
  %318 = vmatpush1.msra.mxu0 0.0
  %319 = vmatprep.subr.mxu0 0.0
  %320 = vmatpush1.msra.mxu0 0.0
  %321 = vmatprep.subr.mxu0 0.0
  %322 = vmatpush1.msra.mxu0 0.0
  %323 = vmatprep.subr.mxu0 0.0
  %324 = vmatpush1.msra.mxu0 0.0
  %325 = vmatprep.subr.mxu0 0.0
  %326 = vmatpush1.msra.mxu0 0.0
  %327 = vmatprep.subr.mxu0 0.0
  %328 = vmatpush1.msra.mxu0 0.0
  %329 = vmatprep.subr.mxu0 0.0
  %330 = vmatpush1.msra.mxu0 0.0
  %331 = vmatprep.mubr.f32.mxu0 0.0
  %332 = vmatmul.mubr.f32.gmra.mrb[0].mxu0 %v186
  %v333 = vpop.f32.mrb[0].mxu0
  %v334 = vadd.f32 0.0, %v333
  %v335 = vpop.f32.mrb[0].mxu0
  %336 = vdwg.mxu0
  %v337 = vmax.f32 %v334, 0.0
  %v338 = vld [vmem:[%s7] sm:$0xff]
  %v339 = vld [vmem:[%s7 + $0x8] sm:$0xff]
  %v340 = vld [vmem:[%s7 + $0x10] sm:$0xff]
  %v341 = vld [vmem:[%s7 + $0x18] sm:$0xff]
  %v342 = vld [vmem:[%s7 + $0x20] sm:$0xff]
  %v343 = vld [vmem:[%s7 + $0x28] sm:$0xff]
  %v344 = vld [vmem:[%s7 + $0x30] sm:$0xff]
  %v345 = vld [vmem:[%s7 + $0x38] sm:$0xff]
  %v346 = vld [vmem:[%s7 + $0x40] sm:$0xff]
  %v347 = vld [vmem:[%s7 + $0x48] sm:$0xff]
  %v348 = vld [vmem:[%s7 + $0x50] sm:$0xff]
  %v349 = vld [vmem:[%s7 + $0x58] sm:$0xff]
  %v350 = vld [vmem:[%s7 + $0x60] sm:$0xff]
  %v351 = vld [vmem:[%s7 + $0x68] sm:$0xff]
  %v352 = vld [vmem:[%s7 + $0x70] sm:$0xff]
  %v353 = vld [vmem:[%s7 + $0x78] sm:$0xff]
  %v354 = vld [vmem:[%s8] sm:$0xff]
  %v355 = vld [vmem:[%s8 + $0x8] sm:$0xff]
  %v356 = vld [vmem:[%s8 + $0x10] sm:$0xff]
  %v357 = vld [vmem:[%s8 + $0x18] sm:$0xff]
  %v358 = vld [vmem:[%s8 + $0x20] sm:$0xff]
  %v359 = vld [vmem:[%s8 + $0x28] sm:$0xff]
  %v360 = vld [vmem:[%s8 + $0x30] sm:$0xff]
  %v361 = vld [vmem:[%s8 + $0x38] sm:$0xff]
  %v362 = vld [vmem:[%s8 + $0x40] sm:$0xff]
  %v363 = vld [vmem:[%s8 + $0x48] sm:$0xff]
  %v364 = vld [vmem:[%s8 + $0x50] sm:$0xff]
  %v365 = vld [vmem:[%s8 + $0x58] sm:$0xff]
  %v366 = vld [vmem:[%s8 + $0x60] sm:$0xff]
  %v367 = vld [vmem:[%s8 + $0x68] sm:$0xff]
  %v368 = vld [vmem:[%s8 + $0x70] sm:$0xff]
  %v369 = vld [vmem:[%s8 + $0x78] sm:$0xff]
  %v370 = vld [vmem:[%s9] sm:$0xff]
  %v371 = vld [vmem:[%s9 + $0x8] sm:$0xff]
  %v372 = vld [vmem:[%s9 + $0x10] sm:$0xff]
  %v373 = vld [vmem:[%s9 + $0x18] sm:$0xff]
  %v374 = vld [vmem:[%s9 + $0x20] sm:$0xff]
  %v375 = vld [vmem:[%s9 + $0x28] sm:$0xff]
  %v376 = vld [vmem:[%s9 + $0x30] sm:$0xff]
  %v377 = vld [vmem:[%s9 + $0x38] sm:$0xff]
  %v378 = vld [vmem:[%s9 + $0x40] sm:$0xff]
  %v379 = vld [vmem:[%s9 + $0x48] sm:$0xff]
  %v380 = vld [vmem:[%s9 + $0x50] sm:$0xff]
  %v381 = vld [vmem:[%s9 + $0x58] sm:$0xff]
  %v382 = vld [vmem:[%s9 + $0x60] sm:$0xff]
  %v383 = vld [vmem:[%s9 + $0x68] sm:$0xff]
  %v384 = vld [vmem:[%s9 + $0x70] sm:$0xff]
  %v385 = vld [vmem:[%s9 + $0x78] sm:$0xff]
  %v386 = vmul.f32 %v354, %v370
  %v387 = vmul.f32 %v355, %v371
  %v388 = vmul.f32 %v356, %v372
  %v389 = vmul.f32 %v357, %v373
  %v390 = vmul.f32 %v358, %v374
  %v391 = vmul.f32 %v359, %v375
  %v392 = vmul.f32 %v360, %v376
  %v393 = vmul.f32 %v361, %v377
  %v394 = vmul.f32 %v362, %v378
  %v395 = vmul.f32 %v363, %v379
  %v396 = vmul.f32 %v364, %v380
  %v397 = vmul.f32 %v365, %v381
  %v398 = vmul.f32 %v366, %v382
  %v399 = vmul.f32 %v367, %v383
  %v400 = vmul.f32 %v368, %v384
  %v401 = vmul.f32 %v369, %v385
  %v402 = vadd.f32 %v338, %v386
  %v403 = vadd.f32 %v339, %v387
  %v404 = vadd.f32 %v340, %v388
  %v405 = vadd.f32 %v341, %v389
  %v406 = vadd.f32 %v342, %v390
  %v407 = vadd.f32 %v343, %v391
  %v408 = vadd.f32 %v344, %v392
  %v409 = vadd.f32 %v345, %v393
  %v410 = vadd.f32 %v346, %v394
  %v411 = vadd.f32 %v347, %v395
  %v412 = vadd.f32 %v348, %v396
  %v413 = vadd.f32 %v349, %v397
  %v414 = vadd.f32 %v350, %v398
  %v415 = vadd.f32 %v351, %v399
  %v416 = vadd.f32 %v352, %v400
  %v417 = vadd.f32 %v353, %v401
  %418 = vmatprep.subr.mxu0 0.0
  %419 = vmatpush1.msra.mxu0 %v402
  %420 = vmatprep.subr.mxu0 0.0
  %421 = vmatpush1.msra.mxu0 %v403
  %422 = vmatprep.subr.mxu0 0.0
  %423 = vmatpush1.msra.mxu0 %v404
  %424 = vmatprep.subr.mxu0 0.0
  %425 = vmatpush1.msra.mxu0 %v405
  %426 = vmatprep.subr.mxu0 0.0
  %427 = vmatpush1.msra.mxu0 %v406
  %428 = vmatprep.subr.mxu0 0.0
  %429 = vmatpush1.msra.mxu0 %v407
  %430 = vmatprep.subr.mxu0 0.0
  %431 = vmatpush1.msra.mxu0 %v408
  %432 = vmatprep.subr.mxu0 0.0
  %433 = vmatpush1.msra.mxu0 %v409
  %434 = vmatprep.subr.mxu0 0.0
  %435 = vmatpush1.msra.mxu0 %v410
  %436 = vmatprep.subr.mxu0 0.0
  %437 = vmatpush1.msra.mxu0 %v411
  %438 = vmatprep.subr.mxu0 0.0
  %439 = vmatpush1.msra.mxu0 %v412
  %440 = vmatprep.subr.mxu0 0.0
  %441 = vmatpush1.msra.mxu0 %v413
  %442 = vmatprep.subr.mxu0 0.0
  %443 = vmatpush1.msra.mxu0 %v414
  %444 = vmatprep.subr.mxu0 0.0
  %445 = vmatpush1.msra.mxu0 %v415
  %446 = vmatprep.subr.mxu0 0.0
  %447 = vmatpush1.msra.mxu0 %v416
  %448 = vmatprep.subr.mxu0 0.0
  %449 = vmatpush1.msra.mxu0 %v417
  %450 = vmatprep.subr.mxu0 0.0
  %451 = vmatpush1.msra.mxu0 0.0
  %452 = vmatprep.subr.mxu0 0.0
  %453 = vmatpush1.msra.mxu0 0.0
  %454 = vmatprep.subr.mxu0 0.0
  %455 = vmatpush1.msra.mxu0 0.0
  %456 = vmatprep.subr.mxu0 0.0
  %457 = vmatpush1.msra.mxu0 0.0
  %458 = vmatprep.subr.mxu0 0.0
  %459 = vmatpush1.msra.mxu0 0.0
  %460 = vmatprep.subr.mxu0 0.0
  %461 = vmatpush1.msra.mxu0 0.0
  %462 = vmatprep.subr.mxu0 0.0
  %463 = vmatpush1.msra.mxu0 0.0
  %464 = vmatprep.subr.mxu0 0.0
  %465 = vmatpush1.msra.mxu0 0.0
  %466 = vmatprep.subr.mxu0 0.0
  %467 = vmatpush1.msra.mxu0 0.0
  %468 = vmatprep.subr.mxu0 0.0
  %469 = vmatpush1.msra.mxu0 0.0
  %470 = vmatprep.subr.mxu0 0.0
  %471 = vmatpush1.msra.mxu0 0.0
  %472 = vmatprep.subr.mxu0 0.0
  %473 = vmatpush1.msra.mxu0 0.0
  %474 = vmatprep.subr.mxu0 0.0
  %475 = vmatpush1.msra.mxu0 0.0
  %476 = vmatprep.subr.mxu0 0.0
  %477 = vmatpush1.msra.mxu0 0.0
  %478 = vmatprep.subr.mxu0 0.0
  %479 = vmatpush1.msra.mxu0 0.0
  %480 = vmatprep.subr.mxu0 0.0
  %481 = vmatpush1.msra.mxu0 0.0
  %482 = vmatprep.mubr.f32.mxu0 0.0
  %483 = vmatmul.mubr.f32.gmra.mrb[0].mxu0 %v337
  %v484 = vpop.f32.mrb[0].mxu0
  %v485 = vadd.f32 0.0, %v484
  %v486 = vpop.f32.mrb[0].mxu0
  %487 = vdwg.mxu0
  %488 = vst [vmem:[%s10] sm:$0xff] %v485
  // Predicated region
  $region42: #{noisy_net_forward.1} parent=0 // pred_check
    _
  $region43: #{noisy_net_forward.1} parent=0 // pred_check_branch
    %490 = sbr.rel (0) target = $region45
  $region44: #{noisy_net_forward.1} parent=0 // pred_region
    _
  $region45: #{noisy_net_forward.1} parent=0 // pred_fallthru
    _
  // Predicated region
  $region46: #{noisy_net_forward.1} parent=0 // pred_check
    _
  $region47: #{noisy_net_forward.1} parent=0 // pred_check_branch
    %492 = sbr.rel (0) target = $region49
  $region48: #{noisy_net_forward.1} parent=0 // pred_region
    _
  $region49: #{noisy_net_forward.1} parent=0 // pred_fallthru
    _

</llo_original>
